<compile_context>
chip_gen: v7x
topology: tpu7x:2x2x1
jax: 0.10.0
libtpu: 0.0.40
codegen_flags: <defaults>
</compile_context>

<pallas_src>
import jax
import jax.numpy as jnp
from jax import lax
from jax.experimental import pallas as pl
from jax.experimental.pallas import tpu as pltpu

OUT_PAD = 128  # lane-dense output width


def spamlinear_kernel(ids_ref, w1f_ref, b1_ref, w2_ref, b2_ref, out_ref):
    ids = ids_ref[...]                          # (TB, T) int32
    TB, T = ids.shape
    V = w1f_ref.shape[0]

    # pooled token frequencies (TB, V) built on the VPU: unrolled static loop
    # over T of broadcast compares, no 3-D one-hot, no cross-sublane reduce.
    vocab_iota = lax.broadcasted_iota(jnp.int32, (TB, V), 1)
    pooled = jnp.zeros((TB, V), jnp.float32)
    for t in range(T):                          # T is small & static -> unrolled
        pooled = pooled + (ids[:, t:t + 1] == vocab_iota).astype(jnp.float32)
    pooled = pooled * (1.0 / T)                 # values are k/T, exact in bf16

    # fused (mean-embedding -> linear1): single MXU pass, bf16 operands, f32 acc
    l1 = jnp.dot(pooled.astype(jnp.bfloat16), w1f_ref[...],
                 preferred_element_type=jnp.float32) + b1_ref[...]
    l1 = jnp.maximum(l1, 0.0)                   # ReLU in f32

    # dropout: identity (eval mode)

    # linear2 + sigmoid, output lanes padded to 128 (zero-padded w2/b2)
    l2 = jnp.dot(l1.astype(jnp.bfloat16), w2_ref[...],
                 preferred_element_type=jnp.float32) + b2_ref[...]
    out_ref[...] = jax.nn.sigmoid(l2)


def spamlinear_forward(x_ids, emb_table, w1_torch, b1_torch, w2_torch, b2_torch):
    """x_ids: (B, T) int32. Weights in PyTorch layout: w1 (target_in, E),
    b1 (target_in,), w2 (target_size, target_in), b2 (target_size,)."""
    B, T = x_ids.shape
    V, E = emb_table.shape
    target_in = w1_torch.shape[0]
    target_size = w2_torch.shape[0]

    # Offline fusion: mean_t E[x_t] @ W1^T == pooled @ (E @ W1^T)
    w1_fused = (emb_table @ w1_torch.T).astype(jnp.bfloat16)            # (V, target_in)
    b1 = b1_torch.reshape(1, target_in).astype(jnp.float32)

    # Zero-pad linear2 to a lane-dense (128-wide) output.
    w2_pad = jnp.zeros((target_in, OUT_PAD), jnp.float32)
    w2_pad = w2_pad.at[:, :target_size].set(w2_torch.T).astype(jnp.bfloat16)
    b2_pad = jnp.zeros((1, OUT_PAD), jnp.float32).at[:, :target_size].set(b2_torch)

    # Pad batch to a sublane-aligned tile and run a 1-D parallel grid over it.
    B8 = ((B + 7) // 8) * 8
    TB = min(128, B8)
    B_pad = ((B + TB - 1) // TB) * TB
    ids = jnp.zeros((B_pad, T), jnp.int32).at[:B, :].set(x_ids)

    out_full = pl.pallas_call(
        spamlinear_kernel,
        out_shape=jax.ShapeDtypeStruct((B_pad, OUT_PAD), jnp.float32),
        grid=(B_pad // TB,),
        in_specs=[
            pl.BlockSpec((TB, T), lambda i: (i, 0)),             # ids: tiled over batch
            pl.BlockSpec((V, target_in), lambda i: (0, 0)),      # fused weight (resident)
            pl.BlockSpec((1, target_in), lambda i: (0, 0)),      # b1
            pl.BlockSpec((target_in, OUT_PAD), lambda i: (0, 0)),  # w2 (padded lanes)
            pl.BlockSpec((1, OUT_PAD), lambda i: (0, 0)),        # b2 (padded lanes)
        ],
        out_specs=pl.BlockSpec((TB, OUT_PAD), lambda i: (i, 0)),
        compiler_params=pltpu.CompilerParams(
            dimension_semantics=("parallel",)),                  # shards across v7x TCs
    )(ids, w1_fused, b1, w2_pad, b2_pad)

    return out_full[:B, :target_size]


if __name__ == "__main__":
    # Module hyperparameters (linear2 hardcodes in_features=24 => target_in=24)
    embedding_dim = 32
    mak_tokens = 64
    target_in = 24
    target_size = 4
    B, T = 2, 8

    key = jax.random.PRNGKey(0)
    k_ids, k_emb, k_w1, k_b1, k_w2, k_b2 = jax.random.split(key, 6)

    emb_table = jax.random.normal(k_emb, (mak_tokens, embedding_dim), jnp.float32)
    w1_torch = jax.random.normal(k_w1, (target_in, embedding_dim), jnp.float32) * 0.1
    b1_torch = jax.random.normal(k_b1, (target_in,), jnp.float32) * 0.1
    w2_torch = jax.random.normal(k_w2, (target_size, target_in), jnp.float32) * 0.1
    b2_torch = jax.random.normal(k_b2, (target_size,), jnp.float32) * 0.1

    x_ids = jax.random.randint(k_ids, (B, T), 0, mak_tokens, jnp.int32)

    out = spamlinear_forward(x_ids, emb_table, w1_torch, b1_torch, w2_torch, b2_torch)
    jax.block_until_ready(out)
    assert out.shape == (B, target_size)

    # Pure-JAX f32 reference (bf16 MXU operands -> loose tolerance).
    ref_mean = emb_table[x_ids].mean(axis=1)                       # (B, E)
    ref_l1 = jnp.maximum(ref_mean @ w1_torch.T + b1_torch, 0.0)
    ref = jax.nn.sigmoid(ref_l1 @ w2_torch.T + b2_torch)
    err = float(jnp.max(jnp.abs(out - ref)))
    assert err < 2e-2, f"max abs err {err}"

    print("KERNEL_OK")
</pallas_src>

<mosaic_0001>
module attributes {stable_mosaic.version = 11 : i64} {
  func.func @spamlinear_kernel(%arg0: i32, %arg1: memref<8x8xi32, #tpu.memory_space<vmem>>, %arg2: memref<64x24xbf16, #tpu.memory_space<vmem>>, %arg3: memref<1x24xf32, #tpu.memory_space<vmem>>, %arg4: memref<24x128xbf16, #tpu.memory_space<vmem>>, %arg5: memref<1x128xf32, #tpu.memory_space<vmem>>, %arg6: memref<8x128xf32, #tpu.memory_space<vmem>>) attributes {dimension_semantics = [#tpu.dimension_semantics<parallel>], iteration_bounds = array<i64: 1>, scalar_prefetch = 0 : i64, scratch_operands = 0 : i64, tpu.core_type = #tpu.core_type<tc>, window_params = [{transform_indices = @transform_0, window_bounds = array<i64: 8, 8>}, {pipeline_mode = #tpu.pipeline_mode<synchronous>, transform_indices = @transform_1, window_bounds = array<i64: 64, 24>}, {pipeline_mode = #tpu.pipeline_mode<synchronous>, transform_indices = @transform_2, window_bounds = array<i64: 1, 24>}, {pipeline_mode = #tpu.pipeline_mode<synchronous>, transform_indices = @transform_3, window_bounds = array<i64: 24, 128>}, {pipeline_mode = #tpu.pipeline_mode<synchronous>, transform_indices = @transform_4, window_bounds = array<i64: 1, 128>}, {transform_indices = @transform_5, window_bounds = array<i64: 8, 128>}]} {
    %c0 = arith.constant 0 : index
    %c0_0 = arith.constant 0 : index
    %0 = vector.load %arg1[%c0, %c0_0] : memref<8x8xi32, #tpu.memory_space<vmem>>, vector<8x8xi32>
    %1 = tpu.iota {dimensions = array<i32: 1>} : vector<8x64xi32>
    %cst = arith.constant 0.000000e+00 : f32
    %2 = vector.broadcast %cst : f32 to vector<8x64xf32>
    %3 = vector.extract_strided_slice %0 {offsets = [0, 0], sizes = [8, 1], strides = [1, 1]} : vector<8x8xi32> to vector<8x1xi32>
    %4 = vector.broadcast %3 : vector<8x1xi32> to vector<8x64xi32>
    %5 = arith.cmpi eq, %4, %1 : vector<8x64xi32>
    %6 = arith.extui %5 : vector<8x64xi1> to vector<8x64xi32>
    %7 = arith.sitofp %6 : vector<8x64xi32> to vector<8x64xf32>
    %8 = arith.addf %2, %7 : vector<8x64xf32>
    %9 = vector.extract_strided_slice %0 {offsets = [0, 1], sizes = [8, 1], strides = [1, 1]} : vector<8x8xi32> to vector<8x1xi32>
    %10 = vector.broadcast %9 : vector<8x1xi32> to vector<8x64xi32>
    %11 = arith.cmpi eq, %10, %1 : vector<8x64xi32>
    %12 = arith.extui %11 : vector<8x64xi1> to vector<8x64xi32>
    %13 = arith.sitofp %12 : vector<8x64xi32> to vector<8x64xf32>
    %14 = arith.addf %8, %13 : vector<8x64xf32>
    %15 = vector.extract_strided_slice %0 {offsets = [0, 2], sizes = [8, 1], strides = [1, 1]} : vector<8x8xi32> to vector<8x1xi32>
    %16 = vector.broadcast %15 : vector<8x1xi32> to vector<8x64xi32>
    %17 = arith.cmpi eq, %16, %1 : vector<8x64xi32>
    %18 = arith.extui %17 : vector<8x64xi1> to vector<8x64xi32>
    %19 = arith.sitofp %18 : vector<8x64xi32> to vector<8x64xf32>
    %20 = arith.addf %14, %19 : vector<8x64xf32>
    %21 = vector.extract_strided_slice %0 {offsets = [0, 3], sizes = [8, 1], strides = [1, 1]} : vector<8x8xi32> to vector<8x1xi32>
    %22 = vector.broadcast %21 : vector<8x1xi32> to vector<8x64xi32>
    %23 = arith.cmpi eq, %22, %1 : vector<8x64xi32>
    %24 = arith.extui %23 : vector<8x64xi1> to vector<8x64xi32>
    %25 = arith.sitofp %24 : vector<8x64xi32> to vector<8x64xf32>
    %26 = arith.addf %20, %25 : vector<8x64xf32>
    %27 = vector.extract_strided_slice %0 {offsets = [0, 4], sizes = [8, 1], strides = [1, 1]} : vector<8x8xi32> to vector<8x1xi32>
    %28 = vector.broadcast %27 : vector<8x1xi32> to vector<8x64xi32>
    %29 = arith.cmpi eq, %28, %1 : vector<8x64xi32>
    %30 = arith.extui %29 : vector<8x64xi1> to vector<8x64xi32>
    %31 = arith.sitofp %30 : vector<8x64xi32> to vector<8x64xf32>
    %32 = arith.addf %26, %31 : vector<8x64xf32>
    %33 = vector.extract_strided_slice %0 {offsets = [0, 5], sizes = [8, 1], strides = [1, 1]} : vector<8x8xi32> to vector<8x1xi32>
    %34 = vector.broadcast %33 : vector<8x1xi32> to vector<8x64xi32>
    %35 = arith.cmpi eq, %34, %1 : vector<8x64xi32>
    %36 = arith.extui %35 : vector<8x64xi1> to vector<8x64xi32>
    %37 = arith.sitofp %36 : vector<8x64xi32> to vector<8x64xf32>
    %38 = arith.addf %32, %37 : vector<8x64xf32>
    %39 = vector.extract_strided_slice %0 {offsets = [0, 6], sizes = [8, 1], strides = [1, 1]} : vector<8x8xi32> to vector<8x1xi32>
    %40 = vector.broadcast %39 : vector<8x1xi32> to vector<8x64xi32>
    %41 = arith.cmpi eq, %40, %1 : vector<8x64xi32>
    %42 = arith.extui %41 : vector<8x64xi1> to vector<8x64xi32>
    %43 = arith.sitofp %42 : vector<8x64xi32> to vector<8x64xf32>
    %44 = arith.addf %38, %43 : vector<8x64xf32>
    %45 = vector.extract_strided_slice %0 {offsets = [0, 7], sizes = [8, 1], strides = [1, 1]} : vector<8x8xi32> to vector<8x1xi32>
    %46 = vector.broadcast %45 : vector<8x1xi32> to vector<8x64xi32>
    %47 = arith.cmpi eq, %46, %1 : vector<8x64xi32>
    %48 = arith.extui %47 : vector<8x64xi1> to vector<8x64xi32>
    %49 = arith.sitofp %48 : vector<8x64xi32> to vector<8x64xf32>
    %50 = arith.addf %44, %49 : vector<8x64xf32>
    %cst_1 = arith.constant 1.250000e-01 : f32
    %51 = vector.broadcast %cst_1 : f32 to vector<8x64xf32>
    %52 = arith.mulf %50, %51 : vector<8x64xf32>
    %53 = arith.truncf %52 : vector<8x64xf32> to vector<8x64xbf16>
    %c0_2 = arith.constant 0 : index
    %c0_3 = arith.constant 0 : index
    %54 = vector.load %arg2[%c0_2, %c0_3] : memref<64x24xbf16, #tpu.memory_space<vmem>>, vector<64x24xbf16>
    %cst_4 = arith.constant dense<0.000000e+00> : vector<8x24xf32>
    %55 = tpu.matmul %53, %54, %cst_4 {dimension_numbers = #tpu.dot_dimension_numbers<[1], [0], [0], [1], [0, 0, 1, 1], [], []>} : vector<8x64xbf16>, vector<64x24xbf16>, vector<8x24xf32> -> vector<8x24xf32>
    %c0_5 = arith.constant 0 : index
    %c0_6 = arith.constant 0 : index
    %56 = vector.load %arg3[%c0_5, %c0_6] : memref<1x24xf32, #tpu.memory_space<vmem>>, vector<1x24xf32>
    %57 = vector.broadcast %56 : vector<1x24xf32> to vector<8x24xf32>
    %58 = arith.addf %55, %57 : vector<8x24xf32>
    %cst_7 = arith.constant 0.000000e+00 : f32
    %59 = vector.broadcast %cst_7 : f32 to vector<8x24xf32>
    %60 = arith.maximumf %58, %59 : vector<8x24xf32>
    %61 = arith.truncf %60 : vector<8x24xf32> to vector<8x24xbf16>
    %c0_8 = arith.constant 0 : index
    %c0_9 = arith.constant 0 : index
    %62 = vector.load %arg4[%c0_8, %c0_9] : memref<24x128xbf16, #tpu.memory_space<vmem>>, vector<24x128xbf16>
    %cst_10 = arith.constant dense<0.000000e+00> : vector<8x128xf32>
    %63 = tpu.matmul %61, %62, %cst_10 {dimension_numbers = #tpu.dot_dimension_numbers<[1], [0], [0], [1], [0, 0, 1, 1], [], []>} : vector<8x24xbf16>, vector<24x128xbf16>, vector<8x128xf32> -> vector<8x128xf32>
    %c0_11 = arith.constant 0 : index
    %c0_12 = arith.constant 0 : index
    %64 = vector.load %arg5[%c0_11, %c0_12] : memref<1x128xf32, #tpu.memory_space<vmem>>, vector<1x128xf32>
    %65 = vector.broadcast %64 : vector<1x128xf32> to vector<8x128xf32>
    %66 = arith.addf %63, %65 : vector<8x128xf32>
    %67 = arith.negf %66 : vector<8x128xf32>
    %68 = math.exp %67 : vector<8x128xf32>
    %cst_13 = arith.constant 1.000000e+00 : f32
    %69 = vector.broadcast %cst_13 : f32 to vector<8x128xf32>
    %70 = arith.addf %69, %68 : vector<8x128xf32>
    %71 = arith.divf %69, %70 : vector<8x128xf32>
    %c0_14 = arith.constant 0 : index
    %c0_15 = arith.constant 0 : index
    %72 = vector.load %arg6[%c0_14, %c0_15] : memref<8x128xf32, #tpu.memory_space<vmem>>, vector<8x128xf32>
    tpu.vector_store %arg6[%c0_14, %c0_15], %71 {strides = array<i32>} : memref<8x128xf32, #tpu.memory_space<vmem>>, vector<8x128xf32>,
    return
  }
  func.func @transform_0(%arg0: i32) -> (i32, i32) {
    %c0_i32 = arith.constant 0 : i32
    %c0_i32_0 = arith.constant 0 : i32
    return %arg0, %c0_i32 : i32, i32
  }
  func.func @transform_1(%arg0: i32) -> (i32, i32) {
    %c0_i32 = arith.constant 0 : i32
    %c0_i32_0 = arith.constant 0 : i32
    %c0_i32_1 = arith.constant 0 : i32
    return %c0_i32, %c0_i32_0 : i32, i32
  }
  func.func @transform_2(%arg0: i32) -> (i32, i32) {
    %c0_i32 = arith.constant 0 : i32
    %c0_i32_0 = arith.constant 0 : i32
    %c0_i32_1 = arith.constant 0 : i32
    return %c0_i32, %c0_i32_0 : i32, i32
  }
  func.func @transform_3(%arg0: i32) -> (i32, i32) {
    %c0_i32 = arith.constant 0 : i32
    %c0_i32_0 = arith.constant 0 : i32
    %c0_i32_1 = arith.constant 0 : i32
    return %c0_i32, %c0_i32_0 : i32, i32
  }
  func.func @transform_4(%arg0: i32) -> (i32, i32) {
    %c0_i32 = arith.constant 0 : i32
    %c0_i32_0 = arith.constant 0 : i32
    %c0_i32_1 = arith.constant 0 : i32
    return %c0_i32, %c0_i32_0 : i32, i32
  }
  func.func @transform_5(%arg0: i32) -> (i32, i32) {
    %c0_i32 = arith.constant 0 : i32
    %c0_i32_0 = arith.constant 0 : i32
    return %arg0, %c0_i32 : i32, i32
  }
}

</mosaic_0001>

<llo_original>
// kernel: tpu_custom_call.1
$region0: #{tpu_custom_call.1}
  #allocation0 [shape = 'u32[]', space=smem, size = 0x4, offset = 0x4, fixed_abs, tag = 'smem constant byte address 0x4 - core index']
  #allocation1 [shape = 'u32[144,128]{1,0:T(1,128)}', space=vmem, size = 0x12000, scoped, tag = 'internal scratch']
  %s0 = inlined_call_operand.vmem [shape: s32[8,8], index: 0, kind: input, shape index: {}]
  %s1 = inlined_call_operand.vmem [shape: bf16[64,24], index: 1, kind: input, shape index: {}]
  %s2 = inlined_call_operand.vmem [shape: f32[1,24], index: 2, kind: input, shape index: {}]
  %s3 = inlined_call_operand.vmem [shape: bf16[24,128], index: 3, kind: input, shape index: {}]
  %s4 = inlined_call_operand.vmem [shape: f32[1,128], index: 4, kind: input, shape index: {}]
  %s5 = inlined_call_operand.hbm [shape: f32[8,128], index: 5, kind: output, shape index: {}]
  %s6 = sld [smem:[#allocation0]]
  $region30: #{tpu_custom_call.1} parent=0
    _
  %s8 = ssub.s32 1, %s6
  %s9 = scalar_select 0, %s8, %s6
  $region1: #{tpu_custom_call.1} parent=0
    #allocation2 [shape = 'u8[4096]{0}', space=vmem, size = 0x1000, scoped, tag = 'output window, operand 0, single buffered']
    #allocation3 [shape = 's32[1]{0}', space=sflag, size = 0x4, scoped, tag = 'scoped memory for tpu_custom_call.1']
    %10 = vsyncpa [#allocation3], 0
    // Predicated region
    $region2: #{tpu_custom_call.1} parent=1 // pred_check
      _
    $region3: #{tpu_custom_call.1} parent=1 // pred_check_branch
      %12 = sbr.rel (0) target = $region5
    $region4: #{tpu_custom_call.1} parent=1 // pred_region
      _
    $region5: #{tpu_custom_call.1} parent=1 // pred_fallthru
      _
    // Predicated region
    $region6: #{tpu_custom_call.1} parent=1 // pred_check
      _
    $region7: #{tpu_custom_call.1} parent=1 // pred_check_branch
      %14 = sbr.rel (0) target = $region9
    $region8: #{tpu_custom_call.1} parent=1 // pred_region
      _
    $region9: #{tpu_custom_call.1} parent=1 // pred_fallthru
      _
    // Predicated region
    $region10: #{tpu_custom_call.1} parent=1 // pred_check
      _
    $region11: #{tpu_custom_call.1} parent=1 // pred_check_branch
      %16 = sbr.rel (0) target = $region13
    $region12: #{tpu_custom_call.1} parent=1 // pred_region
      _
    $region13: #{tpu_custom_call.1} parent=1 // pred_fallthru
      _
    // Predicated region
    $region14: #{tpu_custom_call.1} parent=1 // pred_check
      _
    $region15: #{tpu_custom_call.1} parent=1 // pred_check_branch
      %18 = sbr.rel (0) target = $region17
    $region16: #{tpu_custom_call.1} parent=1 // pred_region
      _
    $region17: #{tpu_custom_call.1} parent=1 // pred_fallthru
      _
    // Predicated region
    $region18: #{tpu_custom_call.1} parent=1 // pred_check
      _
    $region19: #{tpu_custom_call.1} parent=1 // pred_check_branch
      %20 = sbr.rel (0) target = $region21
    $region20: #{tpu_custom_call.1} parent=1 // pred_region
      _
    $region21: #{tpu_custom_call.1} parent=1 // pred_fallthru
      _
    %v22 = vld [vmem:[%s0] sm:$0xff]
    %v23 = vlaneseq
    %v24 = vand.u32 %v23, 127
    %25 = vset.pattern.permute.xlu0 0
    %26 = vperm.xlu0 %25, %v22
    %v27 = vpop.permute.xlu0 %26
    %vm28 = vcmp.eq.s32.totalorder %v27, %v24
    %v29 = vsel %vm28, 1, 0
    %v30 = vcvt.s32.f32 %v29
    %v31 = vadd.f32 %v30, 0.0
    %32 = vset.pattern.permute.xlu0 1
    %33 = vperm.xlu0 %32, %v22
    %v34 = vpop.permute.xlu0 %33
    %vm35 = vcmp.eq.s32.totalorder %v34, %v24
    %v36 = vsel %vm35, 1, 0
    %v37 = vcvt.s32.f32 %v36
    %v38 = vadd.f32 %v31, %v37
    %39 = vset.pattern.permute.xlu0 2
    %40 = vperm.xlu0 %39, %v22
    %v41 = vpop.permute.xlu0 %40
    %vm42 = vcmp.eq.s32.totalorder %v41, %v24
    %v43 = vsel %vm42, 1, 0
    %v44 = vcvt.s32.f32 %v43
    %v45 = vadd.f32 %v38, %v44
    %46 = vset.pattern.permute.xlu0 3
    %47 = vperm.xlu0 %46, %v22
    %v48 = vpop.permute.xlu0 %47
    %vm49 = vcmp.eq.s32.totalorder %v48, %v24
    %v50 = vsel %vm49, 1, 0
    %v51 = vcvt.s32.f32 %v50
    %v52 = vadd.f32 %v45, %v51
    %53 = vset.pattern.permute.xlu0 4
    %54 = vperm.xlu0 %53, %v22
    %v55 = vpop.permute.xlu0 %54
    %vm56 = vcmp.eq.s32.totalorder %v55, %v24
    %v57 = vsel %vm56, 1, 0
    %v58 = vcvt.s32.f32 %v57
    %v59 = vadd.f32 %v52, %v58
    %60 = vset.pattern.permute.xlu0 5
    %61 = vperm.xlu0 %60, %v22
    %v62 = vpop.permute.xlu0 %61
    %vm63 = vcmp.eq.s32.totalorder %v62, %v24
    %v64 = vsel %vm63, 1, 0
    %v65 = vcvt.s32.f32 %v64
    %v66 = vadd.f32 %v59, %v65
    %67 = vset.pattern.permute.xlu0 6
    %68 = vperm.xlu0 %67, %v22
    %v69 = vpop.permute.xlu0 %68
    %vm70 = vcmp.eq.s32.totalorder %v69, %v24
    %v71 = vsel %vm70, 1, 0
    %v72 = vcvt.s32.f32 %v71
    %v73 = vadd.f32 %v66, %v72
    %74 = vset.pattern.permute.xlu0 7
    %75 = vperm.xlu0 %74, %v22
    %v76 = vpop.permute.xlu0 %75
    %vm77 = vcmp.eq.s32.totalorder %v76, %v24
    %v78 = vsel %vm77, 1, 0
    %v79 = vcvt.s32.f32 %v78
    %v80 = vadd.f32 %v73, %v79
    %v81 = vmul.f32 %v80, 0.125
    %v82 = vpack.c.bf16 %v81, %v81
    %v83 = vld [vmem:[%s1] sm:$0xf]
    %v84 = vld [vmem:[%s1 + $0x4] sm:$0xf]
    %v85 = vld [vmem:[%s1 + $0x8] sm:$0xf]
    %v86 = vld [vmem:[%s1 + $0xc] sm:$0xf]
    %v87 = vld [vmem:[%s1 + $0x10] sm:$0xf]
    %v88 = vld [vmem:[%s1 + $0x14] sm:$0xf]
    %v89 = vld [vmem:[%s1 + $0x18] sm:$0xf]
    %v90 = vld [vmem:[%s1 + $0x1c] sm:$0xf]
    %v91 = vld [vmem:[%s2] sm:$0x1]
    %v93 = vlaneseq
    %v94 = vshrl.u32 %v93, 7
    %v95 = vsub.s32 0, %v94
    %v96 = vrot.slane %v91, %v95
    %v106 = vunpack.c.l.b16 %v83
    %v107 = vunpack.c.l.b16 %v84
    %v108 = vunpack.c.l.b16 %v85
    %v109 = vunpack.c.l.b16 %v86
    %v110 = vunpack.c.l.b16 %v87
    %v111 = vunpack.c.l.b16 %v88
    %v112 = vunpack.c.l.b16 %v89
    %v113 = vunpack.c.l.b16 %v90
    %v114 = vpack.c.b16 %v107, %v106
    %v115 = vpack.c.b16 %v109, %v108
    %v116 = vpack.c.b16 %v111, %v110
    %v117 = vpack.c.b16 %v113, %v112
    %vm122 = vcmask 523264
    %v124 = vsel %vm122, %v82, 0
    %126 = vmatprep.subr.bf16.mxu0 0
    %127 = vmatpush1.bf16.msra.mxu0 %v114
    %128 = vmatprep.subr.bf16.mxu0 0
    %129 = vmatpush1.bf16.msra.mxu0 %v115
    %130 = vmatprep.subr.bf16.mxu0 0
    %131 = vmatpush1.bf16.msra.mxu0 %v116
    %132 = vmatprep.subr.bf16.mxu0 0
    %133 = vmatpush1.bf16.msra.mxu0 %v117
    %134 = vmatprep.subr.bf16.mxu0 0
    %135 = vmatpush1.bf16.msra.mxu0 0
    %136 = vmatprep.subr.bf16.mxu0 0
    %137 = vmatpush1.bf16.msra.mxu0 0
    %138 = vmatprep.subr.bf16.mxu0 0
    %139 = vmatpush1.bf16.msra.mxu0 0
    %140 = vmatprep.subr.bf16.mxu0 0
    %141 = vmatpush1.bf16.msra.mxu0 0
    %142 = vmatprep.subr.bf16.mxu0 0
    %143 = vmatpush1.bf16.msra.mxu0 0
    %144 = vmatprep.subr.bf16.mxu0 0
    %145 = vmatpush1.bf16.msra.mxu0 0
    %146 = vmatprep.subr.bf16.mxu0 0
    %147 = vmatpush1.bf16.msra.mxu0 0
    %148 = vmatprep.subr.bf16.mxu0 0
    %149 = vmatpush1.bf16.msra.mxu0 0
    %150 = vmatprep.subr.bf16.mxu0 0
    %151 = vmatpush1.bf16.msra.mxu0 0
    %152 = vmatprep.subr.bf16.mxu0 0
    %153 = vmatpush1.bf16.msra.mxu0 0
    %154 = vmatprep.subr.bf16.mxu0 0
    %155 = vmatpush1.bf16.msra.mxu0 0
    %156 = vmatprep.subr.bf16.mxu0 0
    %157 = vmatpush1.bf16.msra.mxu0 0
    %158 = vmatprep.mubr.bf16.mxu0 0
    %159 = vmatmul.mubr.bf16.gmra.mrb[0].mxu0 %v124
    %v160 = vpop.f32.mrb[0].mxu0
    %v161 = vadd.f32 %v96, %v160
    %v162 = vpop.f32.mrb[0].mxu0
    %v163 = vpop.f32.mrb[0].mxu0
    %v164 = vpop.f32.mrb[0].mxu0
    %165 = vdwg.mxu0
    %v166 = vmax.f32 %v161, 0.0
    %v167 = vpack.c.bf16 %v166, %v166
    %v168 = vld [vmem:[%s3] sm:$0xf]
    %v169 = vld [vmem:[%s3 + $0x4] sm:$0xf]
    %v170 = vld [vmem:[%s3 + $0x8] sm:$0xf]
    %v171 = vld [vmem:[%s4] sm:$0x1]
    %v173 = vlaneseq
    %v174 = vshrl.u32 %v173, 7
    %v175 = vsub.s32 0, %v174
    %v176 = vrot.slane %v171, %v175
    %v181 = vunpack.c.l.b16 %v168
    %v182 = vunpack.c.l.b16 %v169
    %v183 = vunpack.c.l.b16 %v170
    %v184 = vpack.c.b16 %v182, %v181
    %v185 = vpack.c.b16 %v183, %v183
    %vm187 = vcmask 195584
    %v189 = vsel %vm187, %v167, 0
    %vm191 = vcmask 1043456
    %v193 = vsel %vm191, %v185, 0
    %195 = vmatprep.subr.bf16.mxu0 0
    %196 = vmatpush1.bf16.msra.mxu0 %v184
    %197 = vmatprep.subr.bf16.mxu0 0
    %198 = vmatpush1.bf16.msra.mxu0 %v193
    %199 = vmatprep.subr.bf16.mxu0 0
    %200 = vmatpush1.bf16.msra.mxu0 0
    %201 = vmatprep.subr.bf16.mxu0 0
    %202 = vmatpush1.bf16.msra.mxu0 0
    %203 = vmatprep.subr.bf16.mxu0 0
    %204 = vmatpush1.bf16.msra.mxu0 0
    %205 = vmatprep.subr.bf16.mxu0 0
    %206 = vmatpush1.bf16.msra.mxu0 0
    %207 = vmatprep.subr.bf16.mxu0 0
    %208 = vmatpush1.bf16.msra.mxu0 0
    %209 = vmatprep.subr.bf16.mxu0 0
    %210 = vmatpush1.bf16.msra.mxu0 0
    %211 = vmatprep.subr.bf16.mxu0 0
    %212 = vmatpush1.bf16.msra.mxu0 0
    %213 = vmatprep.subr.bf16.mxu0 0
    %214 = vmatpush1.bf16.msra.mxu0 0
    %215 = vmatprep.subr.bf16.mxu0 0
    %216 = vmatpush1.bf16.msra.mxu0 0
    %217 = vmatprep.subr.bf16.mxu0 0
    %218 = vmatpush1.bf16.msra.mxu0 0
    %219 = vmatprep.subr.bf16.mxu0 0
    %220 = vmatpush1.bf16.msra.mxu0 0
    %221 = vmatprep.subr.bf16.mxu0 0
    %222 = vmatpush1.bf16.msra.mxu0 0
    %223 = vmatprep.subr.bf16.mxu0 0
    %224 = vmatpush1.bf16.msra.mxu0 0
    %225 = vmatprep.subr.bf16.mxu0 0
    %226 = vmatpush1.bf16.msra.mxu0 0
    %227 = vmatprep.mubr.bf16.mxu0 0
    %228 = vmatmul.mubr.bf16.gmra.mrb[0].mxu0 %v189
    %v229 = vpop.f32.mrb[0].mxu0
    %v230 = vadd.f32 %v176, %v229
    %v231 = vpop.f32.mrb[0].mxu0
    %v232 = vpop.f32.mrb[0].mxu0
    %v233 = vpop.f32.mrb[0].mxu0
    %234 = vdwg.mxu0
    %v235 = vxor.u32 %v230, 2147483648
    %v236 = vmul.f32 %v235, 1.442695
    %v237 = vpow.pop %v236
    %v238 = vadd.f32 %v237, 1.0
    %v239 = vrcp.pop %v238
    %v240 = vmul.f32 1.0, %v239
    %241 = vst [vmem:[#allocation2] sm:$0xff] %v240
    // Predicated region
    $region22: #{tpu_custom_call.1} parent=1 // pred_check
      _
    $region23: #{tpu_custom_call.1} parent=1 // pred_check_branch
      %243 = sbr.rel (0) target = $region25
    $region24: #{tpu_custom_call.1} parent=1 // pred_region
      %s245 = ssub.s32 128, 128
      %246 = vsyncadd [#allocation3], %s245
      %s248 = sshll.u32 [#allocation2], 4
      %s249 = int_to_ptr.vmem [resolvable:$true] %s248
      %251 = dma.vmem_to_hbm [thread:$0]  %s249, 128, %s5, [#allocation3]
    $region25: #{tpu_custom_call.1} parent=1 // pred_fallthru
      _
    // Predicated region
    $region26: #{tpu_custom_call.1} parent=1 // pred_check
      _
    $region27: #{tpu_custom_call.1} parent=1 // pred_check_branch
      %253 = sbr.rel (0) target = $region29
    $region28: #{tpu_custom_call.1} parent=1 // pred_region
      %254 = dma.done [#allocation3], 128
    $region29: #{tpu_custom_call.1} parent=1 // pred_fallthru
      _
    %255 = vsyncpa [#allocation3], 1

</llo_original>
